<compile_context>
chip_gen: v6e
topology: v6e:2x2x1
jax: 0.10.0
libtpu: 0.0.40
codegen_flags: <defaults>
</compile_context>

<pallas_src>
from collections import namedtuple

import numpy as np
import jax
import jax.numpy as jnp
from jax.experimental import pallas as pl
from jax.experimental.pallas import tpu as pltpu

try:  # prefer scipy's C implementation for the host-side assignment
    from scipy.optimize import linear_sum_assignment as _scipy_lsa
except Exception:  # pragma: no cover
    _scipy_lsa = None


def _round_up(x, m):
    return ((x + m - 1) // m) * m


# ----------------------------------------------------------------------------
# Pallas kernels: fused cost-matrix computation (p = 1)
# ----------------------------------------------------------------------------
def _l1_partial(x_ref, yt_ref, out_shape):
    """Partial L1 cdist of this D chunk as a (TN, TT) f32 value.

    x_ref  : (TN, TD)  pred_logits tile        (N on sublanes, D-chunk on lanes)
    yt_ref : (TD, TT)  target_embeddings^T tile (D-chunk on sublanes, T on lanes)

    Per d we form |x[:, d] (TN,1) - y^T[d, :] (1,TT)| so only (TN, TT)-sized
    temporaries exist and the D reduction is a plain VPU accumulate (never a
    lane-axis reduce).  All slices are static (TD <= 128), so the unrolled body
    stays bounded and uses only static lane offsets.
    """
    tn, tt = out_shape
    td = x_ref.shape[1]
    acc = jnp.zeros((tn, tt), jnp.float32)
    for d in range(td):                       # td <= 128, static unroll
        xd = x_ref[:, d:d + 1]                # (TN, 1)
        yd = yt_ref[d:d + 1, :]               # (1, TT)
        acc = acc + jnp.abs(xd - yd)
    return acc


def _finalize_tile(dist, ne_ref, po_ref, ord_ref, w_ref):
    """Fold the T-independent terms and the loss weights into the cost tile."""
    w_dist = w_ref[0]                         # SMEM scalars
    w_no_empty = w_ref[1]
    w_order = w_ref[2]

    # -log(sigmoid(x)) == softplus(-x), stable form.  (log1p would be marginally
    # more accurate in the tail; plain log keeps the lowering set minimal and the
    # <=1e-7 absolute tail error is irrelevant for an argmin-style assignment.)
    z = -ne_ref[...]                                               # (TN, 1)
    cost_no_empty = jnp.maximum(z, 0.0) + jnp.log(1.0 + jnp.exp(-jnp.abs(z)))

    po_sig = 1.0 / (1.0 + jnp.exp(-po_ref[...]))                   # (TN, 1)
    cost_order = jnp.abs(po_sig - ord_ref[...])                    # (TN, TT)

    return w_dist * dist + w_no_empty * cost_no_empty + w_order * cost_order


def _cost_kernel_single(x_ref, yt_ref, ne_ref, po_ref, ord_ref, w_ref, c_ref):
    """D fits in one chunk: compute + finalize + single store (no init/RMW)."""
    acc = _l1_partial(x_ref, yt_ref, c_ref.shape)
    c_ref[...] = _finalize_tile(acc, ne_ref, po_ref, ord_ref, w_ref)


def _cost_kernel_multi(x_ref, yt_ref, ne_ref, po_ref, ord_ref, w_ref, c_ref):
    """D walked in >=2 chunks along grid axis 2; c_ref is resident across it."""
    k = pl.program_id(2)
    nk = pl.num_programs(2)

    acc = _l1_partial(x_ref, yt_ref, c_ref.shape)

    @pl.when(k == 0)
    def _first():                              # plain store, no zero-init pass
        c_ref[...] = acc

    @pl.when(jnp.logical_and(k > 0, k < nk - 1))
    def _middle():
        c_ref[...] += acc

    @pl.when(k == nk - 1)                      # nk >= 2 here, disjoint from k == 0
    def _last():                               # fuse accumulate + finalize + store
        c_ref[...] = _finalize_tile(c_ref[...] + acc, ne_ref, po_ref, ord_ref, w_ref)


@jax.jit
def hungarian_cost_matrix(pred_logits, pred_no_empty, pred_order_norm,
                          target_embeddings, normalized_order,
                          weight_dist, weight_no_empty, weight_order):
    """Returns the (B, Q, T) matching cost matrix (p = 1)."""
    B, Q, D = pred_logits.shape
    N = B * Q
    T = target_embeddings.shape[0]

    # ---- tile sizes --------------------------------------------------------
    # TT = 128: lane-dense output stores with a 16-vreg accumulator.  TN only needs
    # sublane (8) alignment.  D is taken in one full chunk when D <= 128, otherwise
    # chunked by 128 on the (arbitrary) grid axis 2.  Working set is <1 MiB, far
    # under VMEM on every generation (incl. v7x's 64 MiB) -> no pipelining tuning.
    TT = 128
    T_pad = _round_up(T, TT)
    TN = min(128, _round_up(N, 8))
    N_pad = _round_up(N, TN)

    # v7x has 2 TensorCores: make sure the "parallel" (i, j) grid has >= 2 blocks.
    if (N_pad // TN) * (T_pad // TT) < 2 and TN >= 16 and (TN // 2) % 8 == 0:
        TN //= 2

    MAX_TD = 128                               # lane-legal chunk & unroll bound
    D_pad8 = _round_up(D, 8)
    if D_pad8 <= MAX_TD:
        TD = D_pad8
        D_pad = D_pad8
        multi_chunk = False
    else:
        TD = MAX_TD
        D_pad = _round_up(D, TD)
        multi_chunk = True

    f32 = jnp.float32
    # Zero-padding D is only correct for p=1 (|0-0| = 0 for both operands).
    x = jnp.pad(pred_logits.reshape(N, D).astype(f32),
                ((0, N_pad - N), (0, D_pad - D)))                  # (N_pad, D_pad)
    yt = jnp.pad(target_embeddings.astype(f32).T,
                 ((0, D_pad - D), (0, T_pad - T)))                 # (D_pad, T_pad)
    ne = jnp.pad(pred_no_empty.reshape(N, 1).astype(f32), ((0, N_pad - N), (0, 0)))
    po = jnp.pad(pred_order_norm.reshape(N, 1).astype(f32), ((0, N_pad - N), (0, 0)))
    od = jnp.pad(normalized_order.reshape(1, T).astype(f32), ((0, 0), (0, T_pad - T)))
    w = jnp.stack([jnp.asarray(weight_dist, f32),
                   jnp.asarray(weight_no_empty, f32),
                   jnp.asarray(weight_order, f32)])                # (3,) -> SMEM

    cost_est = pl.CostEstimate(
        flops=int(3 * N_pad * T_pad * D_pad),
        transcendentals=int(2 * N_pad),
        bytes_accessed=int(4 * (N_pad * D_pad + D_pad * T_pad + N_pad * T_pad)))

    out_shape = jax.ShapeDtypeStruct((N_pad, T_pad), f32)
    smem_spec = pl.BlockSpec(memory_space=pltpu.MemorySpace.SMEM)

    if not multi_chunk:
        c_pad = pl.pallas_call(
            _cost_kernel_single,
            out_shape=out_shape,
            grid=(N_pad // TN, T_pad // TT),
            in_specs=[
                pl.BlockSpec((TN, TD), lambda i, j: (i, 0)),       # x
                pl.BlockSpec((TD, TT), lambda i, j: (0, j)),       # y^T
                pl.BlockSpec((TN, 1), lambda i, j: (i, 0)),        # no-empty logits
                pl.BlockSpec((TN, 1), lambda i, j: (i, 0)),        # order logits
                pl.BlockSpec((1, TT), lambda i, j: (0, j)),        # normalized order
                smem_spec,                                         # weights (SMEM)
            ],
            out_specs=pl.BlockSpec((TN, TT), lambda i, j: (i, j)),
            compiler_params=pltpu.CompilerParams(
                dimension_semantics=("parallel", "parallel")),
            cost_estimate=cost_est,
        )(x, yt, ne, po, od, w)
    else:
        c_pad = pl.pallas_call(
            _cost_kernel_multi,
            out_shape=out_shape,
            grid=(N_pad // TN, T_pad // TT, D_pad // TD),          # reduction last
            in_specs=[
                pl.BlockSpec((TN, TD), lambda i, j, k: (i, k)),    # x
                pl.BlockSpec((TD, TT), lambda i, j, k: (k, j)),    # y^T
                pl.BlockSpec((TN, 1), lambda i, j, k: (i, 0)),     # no-empty logits
                pl.BlockSpec((TN, 1), lambda i, j, k: (i, 0)),     # order logits
                pl.BlockSpec((1, TT), lambda i, j, k: (0, j)),     # normalized order
                smem_spec,                                         # weights (SMEM)
            ],
            out_specs=pl.BlockSpec((TN, TT), lambda i, j, k: (i, j)),
            compiler_params=pltpu.CompilerParams(
                dimension_semantics=("parallel", "parallel", "arbitrary")),
            cost_estimate=cost_est,
        )(x, yt, ne, po, od, w)

    return c_pad[:N, :T].reshape(B, Q, T)


# ----------------------------------------------------------------------------
# Host-side Hungarian algorithm (scipy if available, else numpy fallback)
# ----------------------------------------------------------------------------
def linear_sum_assignment_np(cost):
    cost = np.asarray(cost, dtype=np.float64)
    transposed = False
    if cost.shape[0] > cost.shape[1]:
        cost = cost.T
        transposed = True
    n, m = cost.shape
    INF = float("inf")
    u = np.zeros(n + 1)
    v = np.zeros(m + 1)
    p = np.zeros(m + 1, dtype=np.int64)
    way = np.zeros(m + 1, dtype=np.int64)
    for i in range(1, n + 1):
        p[0] = i
        j0 = 0
        minv = np.full(m + 1, INF)
        used = np.zeros(m + 1, dtype=bool)
        while True:
            used[j0] = True
            i0 = p[j0]
            delta, j1 = INF, -1
            for j in range(1, m + 1):
                if not used[j]:
                    cur = cost[i0 - 1, j - 1] - u[i0] - v[j]
                    if cur < minv[j]:
                        minv[j] = cur
                        way[j] = j0
                    if minv[j] < delta:
                        delta = minv[j]
                        j1 = j
            for j in range(m + 1):
                if used[j]:
                    u[p[j]] += delta
                    v[j] -= delta
                else:
                    minv[j] -= delta
            j0 = j1
            if p[j0] == 0:
                break
        while True:
            j1 = way[j0]
            p[j0] = p[j1]
            j0 = j1
            if j0 == 0:
                break
    rows, cols = [], []
    for j in range(1, m + 1):
        if p[j] != 0:
            rows.append(p[j] - 1)
            cols.append(j - 1)
    rows = np.asarray(rows, dtype=np.int64)
    cols = np.asarray(cols, dtype=np.int64)
    if transposed:
        rows, cols = cols, rows
    order = np.argsort(rows)
    return rows[order], cols[order]


def _lsa(cost):
    if _scipy_lsa is not None:
        i, j = _scipy_lsa(cost)
        return np.asarray(i, np.int64), np.asarray(j, np.int64)
    return linear_sum_assignment_np(cost)


# ----------------------------------------------------------------------------
# HungarianMatcher (JAX / Pallas port)
# ----------------------------------------------------------------------------
Outputs = namedtuple("Outputs", ["pred_logits", "pred_no_empty", "pred_order_norm"])
Targets = namedtuple("Targets", ["embeddings", "target_length"])


def _host_normalized_order(target_length, B):
    max_len = int(target_length.max())
    base = np.broadcast_to(np.arange(max_len)[None, :], (B, max_len))
    # NOTE: deliberate deviation from the reference: the reference divides by
    # (target_length - 1), which is a division by zero (-> nan costs) when a batch
    # element has exactly one target.  We clamp the denominator to 1 instead.
    denom = np.maximum(target_length[:, None].astype(np.float64) - 1.0, 1.0)
    norm = base / denom
    mask = base < target_length[:, None]
    return norm[mask].astype(np.float32)          # (T,), row-major over batches


class HungarianMatcher:
    def __init__(self, weight_dist, weight_no_empty, weight_order):
        self.weight_dist = weight_dist
        self.weight_no_empty = weight_no_empty
        self.weight_order = weight_order

    def __call__(self, outputs, targets, p=1):
        # TODO(synk): only the p=1 (L1) cdist is implemented in the Pallas kernel.
        assert p == 1, "only p=1 is implemented"
        pred_logits = outputs.pred_logits
        B, Q, D = pred_logits.shape
        assert D == targets.embeddings.shape[-1]

        target_length = np.asarray(targets.target_length, dtype=np.int64)
        normalized_order = _host_normalized_order(target_length, B)

        C = hungarian_cost_matrix(
            pred_logits, outputs.pred_no_empty, outputs.pred_order_norm,
            targets.embeddings, jnp.asarray(normalized_order),
            self.weight_dist, self.weight_no_empty, self.weight_order)

        # TODO(synk): linear_sum_assignment is a sequential combinatorial algorithm
        # with no Pallas equivalent; it runs on host.
        C = np.asarray(jax.device_get(C))                          # (B, Q, T)

        indices = []
        offset = 0
        for b in range(B):
            sz = int(target_length[b])
            c_b = C[b, :, offset:offset + sz]
            i, j = _lsa(c_b)
            indices.append((np.asarray(i, np.int64), np.asarray(j, np.int64)))
            offset += sz
        return indices


# ----------------------------------------------------------------------------
# Demo / self-check
# ----------------------------------------------------------------------------
def _reference_cost(pred_logits, pred_no_empty, pred_order_norm,
                    target_embeddings, normalized_order, wd, wne, wo):
    B, Q, D = pred_logits.shape
    x = np.asarray(pred_logits, np.float64).reshape(B * Q, D)
    y = np.asarray(target_embeddings, np.float64)
    cost_dist = np.abs(x[:, None, :] - y[None, :, :]).sum(-1)
    ne = np.asarray(pred_no_empty, np.float64).reshape(-1, 1)
    cost_ne = -np.log(1.0 / (1.0 + np.exp(-ne)))
    po = 1.0 / (1.0 + np.exp(-np.asarray(pred_order_norm, np.float64).reshape(-1, 1)))
    cost_ord = np.abs(po - np.asarray(normalized_order, np.float64)[None, :])
    C = wne * cost_ne + wd * cost_dist + wo * cost_ord
    return C.reshape(B, Q, -1)


if __name__ == "__main__":
    B, Q, D = 2, 8, 32
    target_length = np.array([3, 5], dtype=np.int64)
    T = int(target_length.sum())

    key = jax.random.PRNGKey(0)
    k1, k2, k3, k4, k5, k6 = jax.random.split(key, 6)
    pred_logits = jax.random.normal(k1, (B, Q, D), dtype=jnp.float32)
    pred_no_empty = jax.random.normal(k2, (B, Q), dtype=jnp.float32)
    pred_order_norm = jax.random.normal(k3, (B, Q), dtype=jnp.float32)
    target_embeddings = jax.random.normal(k4, (T, D), dtype=jnp.float32)

    outputs = Outputs(pred_logits, pred_no_empty, pred_order_norm)
    targets = Targets(target_embeddings, target_length)

    matcher = HungarianMatcher(weight_dist=1.0, weight_no_empty=2.0, weight_order=0.5)

    norm_order = _host_normalized_order(target_length, B)

    # --- check 1: single-chunk path (D <= 128) ------------------------------
    C_kernel = hungarian_cost_matrix(
        pred_logits, pred_no_empty, pred_order_norm, target_embeddings,
        jnp.asarray(norm_order), 1.0, 2.0, 0.5)
    C_kernel = jax.block_until_ready(C_kernel)
    C_ref = _reference_cost(pred_logits, pred_no_empty, pred_order_norm,
                            target_embeddings, norm_order, 1.0, 2.0, 0.5)
    assert np.allclose(np.asarray(C_kernel), C_ref, atol=1e-4, rtol=1e-4), \
        "cost matrix mismatch (single-chunk path)"

    # --- check 2: multi-chunk path (D > 128, exercises first/middle/last) ----
    D2 = 384
    pred_logits2 = jax.random.normal(k5, (B, Q, D2), dtype=jnp.float32)
    target_embeddings2 = jax.random.normal(k6, (T, D2), dtype=jnp.float32)
    C_kernel2 = hungarian_cost_matrix(
        pred_logits2, pred_no_empty, pred_order_norm, target_embeddings2,
        jnp.asarray(norm_order), 1.0, 2.0, 0.5)
    C_kernel2 = jax.block_until_ready(C_kernel2)
    C_ref2 = _reference_cost(pred_logits2, pred_no_empty, pred_order_norm,
                             target_embeddings2, norm_order, 1.0, 2.0, 0.5)
    assert np.allclose(np.asarray(C_kernel2), C_ref2, atol=1e-3, rtol=1e-4), \
        "cost matrix mismatch (multi-chunk path)"

    # --- full forward pass (kernel + host Hungarian assignment) -------------
    indices = matcher(outputs, targets)
    for b, (i, j) in enumerate(indices):
        assert len(i) == len(j) == min(Q, int(target_length[b]))

    print("KERNEL_OK")
</pallas_src>

<mosaic_0001>
module attributes {stable_mosaic.version = 11 : i64} {
  func.func @_cost_kernel_single(%arg0: i32, %arg1: i32, %arg2: memref<8x32xf32, #tpu.memory_space<vmem>>, %arg3: memref<32x128xf32, #tpu.memory_space<vmem>>, %arg4: memref<8x1xf32, #tpu.memory_space<vmem>>, %arg5: memref<8x1xf32, #tpu.memory_space<vmem>>, %arg6: memref<1x128xf32, #tpu.memory_space<vmem>>, %arg7: memref<3xf32, #tpu.memory_space<smem>>, %arg8: memref<8x128xf32, #tpu.memory_space<vmem>>) attributes {dimension_semantics = [#tpu.dimension_semantics<parallel>, #tpu.dimension_semantics<parallel>], iteration_bounds = array<i64: 2, 1>, scalar_prefetch = 0 : i64, scratch_operands = 0 : i64, tpu.core_type = #tpu.core_type<tc>, window_params = [{transform_indices = @transform_0, window_bounds = array<i64: 8, 32>}, {transform_indices = @transform_1, window_bounds = array<i64: 32, 128>}, {transform_indices = @transform_2, window_bounds = array<i64: 8, 1>}, {transform_indices = @transform_3, window_bounds = array<i64: 8, 1>}, {transform_indices = @transform_4, window_bounds = array<i64: 1, 128>}, {transform_indices = @transform_5, window_bounds = array<i64: 3>}, {transform_indices = @transform_6, window_bounds = array<i64: 8, 128>}]} {
    %cst = arith.constant 0.000000e+00 : f32
    %0 = vector.broadcast %cst : f32 to vector<8x128xf32>
    %c0 = arith.constant 0 : index
    %c0_0 = arith.constant 0 : index
    %1 = vector.load %arg2[%c0, %c0_0] : memref<8x32xf32, #tpu.memory_space<vmem>>, vector<8x1xf32>
    %c0_1 = arith.constant 0 : index
    %c0_2 = arith.constant 0 : index
    %2 = vector.load %arg3[%c0_1, %c0_2] : memref<32x128xf32, #tpu.memory_space<vmem>>, vector<1x128xf32>
    %3 = vector.broadcast %1 : vector<8x1xf32> to vector<8x128xf32>
    %4 = vector.broadcast %2 : vector<1x128xf32> to vector<8x128xf32>
    %5 = arith.subf %3, %4 : vector<8x128xf32>
    %6 = math.absf %5 : vector<8x128xf32>
    %7 = arith.addf %0, %6 : vector<8x128xf32>
    %c0_3 = arith.constant 0 : index
    %c1 = arith.constant 1 : index
    %8 = vector.load %arg2[%c0_3, %c1] : memref<8x32xf32, #tpu.memory_space<vmem>>, vector<8x1xf32>
    %c1_4 = arith.constant 1 : index
    %c0_5 = arith.constant 0 : index
    %9 = vector.load %arg3[%c1_4, %c0_5] : memref<32x128xf32, #tpu.memory_space<vmem>>, vector<1x128xf32>
    %10 = vector.broadcast %8 : vector<8x1xf32> to vector<8x128xf32>
    %11 = vector.broadcast %9 : vector<1x128xf32> to vector<8x128xf32>
    %12 = arith.subf %10, %11 : vector<8x128xf32>
    %13 = math.absf %12 : vector<8x128xf32>
    %14 = arith.addf %7, %13 : vector<8x128xf32>
    %c0_6 = arith.constant 0 : index
    %c2 = arith.constant 2 : index
    %15 = vector.load %arg2[%c0_6, %c2] : memref<8x32xf32, #tpu.memory_space<vmem>>, vector<8x1xf32>
    %c2_7 = arith.constant 2 : index
    %c0_8 = arith.constant 0 : index
    %16 = vector.load %arg3[%c2_7, %c0_8] : memref<32x128xf32, #tpu.memory_space<vmem>>, vector<1x128xf32>
    %17 = vector.broadcast %15 : vector<8x1xf32> to vector<8x128xf32>
    %18 = vector.broadcast %16 : vector<1x128xf32> to vector<8x128xf32>
    %19 = arith.subf %17, %18 : vector<8x128xf32>
    %20 = math.absf %19 : vector<8x128xf32>
    %21 = arith.addf %14, %20 : vector<8x128xf32>
    %c0_9 = arith.constant 0 : index
    %c3 = arith.constant 3 : index
    %22 = vector.load %arg2[%c0_9, %c3] : memref<8x32xf32, #tpu.memory_space<vmem>>, vector<8x1xf32>
    %c3_10 = arith.constant 3 : index
    %c0_11 = arith.constant 0 : index
    %23 = vector.load %arg3[%c3_10, %c0_11] : memref<32x128xf32, #tpu.memory_space<vmem>>, vector<1x128xf32>
    %24 = vector.broadcast %22 : vector<8x1xf32> to vector<8x128xf32>
    %25 = vector.broadcast %23 : vector<1x128xf32> to vector<8x128xf32>
    %26 = arith.subf %24, %25 : vector<8x128xf32>
    %27 = math.absf %26 : vector<8x128xf32>
    %28 = arith.addf %21, %27 : vector<8x128xf32>
    %c0_12 = arith.constant 0 : index
    %c4 = arith.constant 4 : index
    %29 = vector.load %arg2[%c0_12, %c4] : memref<8x32xf32, #tpu.memory_space<vmem>>, vector<8x1xf32>
    %c4_13 = arith.constant 4 : index
    %c0_14 = arith.constant 0 : index
    %30 = vector.load %arg3[%c4_13, %c0_14] : memref<32x128xf32, #tpu.memory_space<vmem>>, vector<1x128xf32>
    %31 = vector.broadcast %29 : vector<8x1xf32> to vector<8x128xf32>
    %32 = vector.broadcast %30 : vector<1x128xf32> to vector<8x128xf32>
    %33 = arith.subf %31, %32 : vector<8x128xf32>
    %34 = math.absf %33 : vector<8x128xf32>
    %35 = arith.addf %28, %34 : vector<8x128xf32>
    %c0_15 = arith.constant 0 : index
    %c5 = arith.constant 5 : index
    %36 = vector.load %arg2[%c0_15, %c5] : memref<8x32xf32, #tpu.memory_space<vmem>>, vector<8x1xf32>
    %c5_16 = arith.constant 5 : index
    %c0_17 = arith.constant 0 : index
    %37 = vector.load %arg3[%c5_16, %c0_17] : memref<32x128xf32, #tpu.memory_space<vmem>>, vector<1x128xf32>
    %38 = vector.broadcast %36 : vector<8x1xf32> to vector<8x128xf32>
    %39 = vector.broadcast %37 : vector<1x128xf32> to vector<8x128xf32>
    %40 = arith.subf %38, %39 : vector<8x128xf32>
    %41 = math.absf %40 : vector<8x128xf32>
    %42 = arith.addf %35, %41 : vector<8x128xf32>
    %c0_18 = arith.constant 0 : index
    %c6 = arith.constant 6 : index
    %43 = vector.load %arg2[%c0_18, %c6] : memref<8x32xf32, #tpu.memory_space<vmem>>, vector<8x1xf32>
    %c6_19 = arith.constant 6 : index
    %c0_20 = arith.constant 0 : index
    %44 = vector.load %arg3[%c6_19, %c0_20] : memref<32x128xf32, #tpu.memory_space<vmem>>, vector<1x128xf32>
    %45 = vector.broadcast %43 : vector<8x1xf32> to vector<8x128xf32>
    %46 = vector.broadcast %44 : vector<1x128xf32> to vector<8x128xf32>
    %47 = arith.subf %45, %46 : vector<8x128xf32>
    %48 = math.absf %47 : vector<8x128xf32>
    %49 = arith.addf %42, %48 : vector<8x128xf32>
    %c0_21 = arith.constant 0 : index
    %c7 = arith.constant 7 : index
    %50 = vector.load %arg2[%c0_21, %c7] : memref<8x32xf32, #tpu.memory_space<vmem>>, vector<8x1xf32>
    %c7_22 = arith.constant 7 : index
    %c0_23 = arith.constant 0 : index
    %51 = vector.load %arg3[%c7_22, %c0_23] : memref<32x128xf32, #tpu.memory_space<vmem>>, vector<1x128xf32>
    %52 = vector.broadcast %50 : vector<8x1xf32> to vector<8x128xf32>
    %53 = vector.broadcast %51 : vector<1x128xf32> to vector<8x128xf32>
    %54 = arith.subf %52, %53 : vector<8x128xf32>
    %55 = math.absf %54 : vector<8x128xf32>
    %56 = arith.addf %49, %55 : vector<8x128xf32>
    %c0_24 = arith.constant 0 : index
    %c8 = arith.constant 8 : index
    %57 = vector.load %arg2[%c0_24, %c8] : memref<8x32xf32, #tpu.memory_space<vmem>>, vector<8x1xf32>
    %c8_25 = arith.constant 8 : index
    %c0_26 = arith.constant 0 : index
    %58 = vector.load %arg3[%c8_25, %c0_26] : memref<32x128xf32, #tpu.memory_space<vmem>>, vector<1x128xf32>
    %59 = vector.broadcast %57 : vector<8x1xf32> to vector<8x128xf32>
    %60 = vector.broadcast %58 : vector<1x128xf32> to vector<8x128xf32>
    %61 = arith.subf %59, %60 : vector<8x128xf32>
    %62 = math.absf %61 : vector<8x128xf32>
    %63 = arith.addf %56, %62 : vector<8x128xf32>
    %c0_27 = arith.constant 0 : index
    %c9 = arith.constant 9 : index
    %64 = vector.load %arg2[%c0_27, %c9] : memref<8x32xf32, #tpu.memory_space<vmem>>, vector<8x1xf32>
    %c9_28 = arith.constant 9 : index
    %c0_29 = arith.constant 0 : index
    %65 = vector.load %arg3[%c9_28, %c0_29] : memref<32x128xf32, #tpu.memory_space<vmem>>, vector<1x128xf32>
    %66 = vector.broadcast %64 : vector<8x1xf32> to vector<8x128xf32>
    %67 = vector.broadcast %65 : vector<1x128xf32> to vector<8x128xf32>
    %68 = arith.subf %66, %67 : vector<8x128xf32>
    %69 = math.absf %68 : vector<8x128xf32>
    %70 = arith.addf %63, %69 : vector<8x128xf32>
    %c0_30 = arith.constant 0 : index
    %c10 = arith.constant 10 : index
    %71 = vector.load %arg2[%c0_30, %c10] : memref<8x32xf32, #tpu.memory_space<vmem>>, vector<8x1xf32>
    %c10_31 = arith.constant 10 : index
    %c0_32 = arith.constant 0 : index
    %72 = vector.load %arg3[%c10_31, %c0_32] : memref<32x128xf32, #tpu.memory_space<vmem>>, vector<1x128xf32>
    %73 = vector.broadcast %71 : vector<8x1xf32> to vector<8x128xf32>
    %74 = vector.broadcast %72 : vector<1x128xf32> to vector<8x128xf32>
    %75 = arith.subf %73, %74 : vector<8x128xf32>
    %76 = math.absf %75 : vector<8x128xf32>
    %77 = arith.addf %70, %76 : vector<8x128xf32>
    %c0_33 = arith.constant 0 : index
    %c11 = arith.constant 11 : index
    %78 = vector.load %arg2[%c0_33, %c11] : memref<8x32xf32, #tpu.memory_space<vmem>>, vector<8x1xf32>
    %c11_34 = arith.constant 11 : index
    %c0_35 = arith.constant 0 : index
    %79 = vector.load %arg3[%c11_34, %c0_35] : memref<32x128xf32, #tpu.memory_space<vmem>>, vector<1x128xf32>
    %80 = vector.broadcast %78 : vector<8x1xf32> to vector<8x128xf32>
    %81 = vector.broadcast %79 : vector<1x128xf32> to vector<8x128xf32>
    %82 = arith.subf %80, %81 : vector<8x128xf32>
    %83 = math.absf %82 : vector<8x128xf32>
    %84 = arith.addf %77, %83 : vector<8x128xf32>
    %c0_36 = arith.constant 0 : index
    %c12 = arith.constant 12 : index
    %85 = vector.load %arg2[%c0_36, %c12] : memref<8x32xf32, #tpu.memory_space<vmem>>, vector<8x1xf32>
    %c12_37 = arith.constant 12 : index
    %c0_38 = arith.constant 0 : index
    %86 = vector.load %arg3[%c12_37, %c0_38] : memref<32x128xf32, #tpu.memory_space<vmem>>, vector<1x128xf32>
    %87 = vector.broadcast %85 : vector<8x1xf32> to vector<8x128xf32>
    %88 = vector.broadcast %86 : vector<1x128xf32> to vector<8x128xf32>
    %89 = arith.subf %87, %88 : vector<8x128xf32>
    %90 = math.absf %89 : vector<8x128xf32>
    %91 = arith.addf %84, %90 : vector<8x128xf32>
    %c0_39 = arith.constant 0 : index
    %c13 = arith.constant 13 : index
    %92 = vector.load %arg2[%c0_39, %c13] : memref<8x32xf32, #tpu.memory_space<vmem>>, vector<8x1xf32>
    %c13_40 = arith.constant 13 : index
    %c0_41 = arith.constant 0 : index
    %93 = vector.load %arg3[%c13_40, %c0_41] : memref<32x128xf32, #tpu.memory_space<vmem>>, vector<1x128xf32>
    %94 = vector.broadcast %92 : vector<8x1xf32> to vector<8x128xf32>
    %95 = vector.broadcast %93 : vector<1x128xf32> to vector<8x128xf32>
    %96 = arith.subf %94, %95 : vector<8x128xf32>
    %97 = math.absf %96 : vector<8x128xf32>
    %98 = arith.addf %91, %97 : vector<8x128xf32>
    %c0_42 = arith.constant 0 : index
    %c14 = arith.constant 14 : index
    %99 = vector.load %arg2[%c0_42, %c14] : memref<8x32xf32, #tpu.memory_space<vmem>>, vector<8x1xf32>
    %c14_43 = arith.constant 14 : index
    %c0_44 = arith.constant 0 : index
    %100 = vector.load %arg3[%c14_43, %c0_44] : memref<32x128xf32, #tpu.memory_space<vmem>>, vector<1x128xf32>
    %101 = vector.broadcast %99 : vector<8x1xf32> to vector<8x128xf32>
    %102 = vector.broadcast %100 : vector<1x128xf32> to vector<8x128xf32>
    %103 = arith.subf %101, %102 : vector<8x128xf32>
    %104 = math.absf %103 : vector<8x128xf32>
    %105 = arith.addf %98, %104 : vector<8x128xf32>
    %c0_45 = arith.constant 0 : index
    %c15 = arith.constant 15 : index
    %106 = vector.load %arg2[%c0_45, %c15] : memref<8x32xf32, #tpu.memory_space<vmem>>, vector<8x1xf32>
    %c15_46 = arith.constant 15 : index
    %c0_47 = arith.constant 0 : index
    %107 = vector.load %arg3[%c15_46, %c0_47] : memref<32x128xf32, #tpu.memory_space<vmem>>, vector<1x128xf32>
    %108 = vector.broadcast %106 : vector<8x1xf32> to vector<8x128xf32>
    %109 = vector.broadcast %107 : vector<1x128xf32> to vector<8x128xf32>
    %110 = arith.subf %108, %109 : vector<8x128xf32>
    %111 = math.absf %110 : vector<8x128xf32>
    %112 = arith.addf %105, %111 : vector<8x128xf32>
    %c0_48 = arith.constant 0 : index
    %c16 = arith.constant 16 : index
    %113 = vector.load %arg2[%c0_48, %c16] : memref<8x32xf32, #tpu.memory_space<vmem>>, vector<8x1xf32>
    %c16_49 = arith.constant 16 : index
    %c0_50 = arith.constant 0 : index
    %114 = vector.load %arg3[%c16_49, %c0_50] : memref<32x128xf32, #tpu.memory_space<vmem>>, vector<1x128xf32>
    %115 = vector.broadcast %113 : vector<8x1xf32> to vector<8x128xf32>
    %116 = vector.broadcast %114 : vector<1x128xf32> to vector<8x128xf32>
    %117 = arith.subf %115, %116 : vector<8x128xf32>
    %118 = math.absf %117 : vector<8x128xf32>
    %119 = arith.addf %112, %118 : vector<8x128xf32>
    %c0_51 = arith.constant 0 : index
    %c17 = arith.constant 17 : index
    %120 = vector.load %arg2[%c0_51, %c17] : memref<8x32xf32, #tpu.memory_space<vmem>>, vector<8x1xf32>
    %c17_52 = arith.constant 17 : index
    %c0_53 = arith.constant 0 : index
    %121 = vector.load %arg3[%c17_52, %c0_53] : memref<32x128xf32, #tpu.memory_space<vmem>>, vector<1x128xf32>
    %122 = vector.broadcast %120 : vector<8x1xf32> to vector<8x128xf32>
    %123 = vector.broadcast %121 : vector<1x128xf32> to vector<8x128xf32>
    %124 = arith.subf %122, %123 : vector<8x128xf32>
    %125 = math.absf %124 : vector<8x128xf32>
    %126 = arith.addf %119, %125 : vector<8x128xf32>
    %c0_54 = arith.constant 0 : index
    %c18 = arith.constant 18 : index
    %127 = vector.load %arg2[%c0_54, %c18] : memref<8x32xf32, #tpu.memory_space<vmem>>, vector<8x1xf32>
    %c18_55 = arith.constant 18 : index
    %c0_56 = arith.constant 0 : index
    %128 = vector.load %arg3[%c18_55, %c0_56] : memref<32x128xf32, #tpu.memory_space<vmem>>, vector<1x128xf32>
    %129 = vector.broadcast %127 : vector<8x1xf32> to vector<8x128xf32>
    %130 = vector.broadcast %128 : vector<1x128xf32> to vector<8x128xf32>
    %131 = arith.subf %129, %130 : vector<8x128xf32>
    %132 = math.absf %131 : vector<8x128xf32>
    %133 = arith.addf %126, %132 : vector<8x128xf32>
    %c0_57 = arith.constant 0 : index
    %c19 = arith.constant 19 : index
    %134 = vector.load %arg2[%c0_57, %c19] : memref<8x32xf32, #tpu.memory_space<vmem>>, vector<8x1xf32>
    %c19_58 = arith.constant 19 : index
    %c0_59 = arith.constant 0 : index
    %135 = vector.load %arg3[%c19_58, %c0_59] : memref<32x128xf32, #tpu.memory_space<vmem>>, vector<1x128xf32>
    %136 = vector.broadcast %134 : vector<8x1xf32> to vector<8x128xf32>
    %137 = vector.broadcast %135 : vector<1x128xf32> to vector<8x128xf32>
    %138 = arith.subf %136, %137 : vector<8x128xf32>
    %139 = math.absf %138 : vector<8x128xf32>
    %140 = arith.addf %133, %139 : vector<8x128xf32>
    %c0_60 = arith.constant 0 : index
    %c20 = arith.constant 20 : index
    %141 = vector.load %arg2[%c0_60, %c20] : memref<8x32xf32, #tpu.memory_space<vmem>>, vector<8x1xf32>
    %c20_61 = arith.constant 20 : index
    %c0_62 = arith.constant 0 : index
    %142 = vector.load %arg3[%c20_61, %c0_62] : memref<32x128xf32, #tpu.memory_space<vmem>>, vector<1x128xf32>
    %143 = vector.broadcast %141 : vector<8x1xf32> to vector<8x128xf32>
    %144 = vector.broadcast %142 : vector<1x128xf32> to vector<8x128xf32>
    %145 = arith.subf %143, %144 : vector<8x128xf32>
    %146 = math.absf %145 : vector<8x128xf32>
    %147 = arith.addf %140, %146 : vector<8x128xf32>
    %c0_63 = arith.constant 0 : index
    %c21 = arith.constant 21 : index
    %148 = vector.load %arg2[%c0_63, %c21] : memref<8x32xf32, #tpu.memory_space<vmem>>, vector<8x1xf32>
    %c21_64 = arith.constant 21 : index
    %c0_65 = arith.constant 0 : index
    %149 = vector.load %arg3[%c21_64, %c0_65] : memref<32x128xf32, #tpu.memory_space<vmem>>, vector<1x128xf32>
    %150 = vector.broadcast %148 : vector<8x1xf32> to vector<8x128xf32>
    %151 = vector.broadcast %149 : vector<1x128xf32> to vector<8x128xf32>
    %152 = arith.subf %150, %151 : vector<8x128xf32>
    %153 = math.absf %152 : vector<8x128xf32>
    %154 = arith.addf %147, %153 : vector<8x128xf32>
    %c0_66 = arith.constant 0 : index
    %c22 = arith.constant 22 : index
    %155 = vector.load %arg2[%c0_66, %c22] : memref<8x32xf32, #tpu.memory_space<vmem>>, vector<8x1xf32>
    %c22_67 = arith.constant 22 : index
    %c0_68 = arith.constant 0 : index
    %156 = vector.load %arg3[%c22_67, %c0_68] : memref<32x128xf32, #tpu.memory_space<vmem>>, vector<1x128xf32>
    %157 = vector.broadcast %155 : vector<8x1xf32> to vector<8x128xf32>
    %158 = vector.broadcast %156 : vector<1x128xf32> to vector<8x128xf32>
    %159 = arith.subf %157, %158 : vector<8x128xf32>
    %160 = math.absf %159 : vector<8x128xf32>
    %161 = arith.addf %154, %160 : vector<8x128xf32>
    %c0_69 = arith.constant 0 : index
    %c23 = arith.constant 23 : index
    %162 = vector.load %arg2[%c0_69, %c23] : memref<8x32xf32, #tpu.memory_space<vmem>>, vector<8x1xf32>
    %c23_70 = arith.constant 23 : index
    %c0_71 = arith.constant 0 : index
    %163 = vector.load %arg3[%c23_70, %c0_71] : memref<32x128xf32, #tpu.memory_space<vmem>>, vector<1x128xf32>
    %164 = vector.broadcast %162 : vector<8x1xf32> to vector<8x128xf32>
    %165 = vector.broadcast %163 : vector<1x128xf32> to vector<8x128xf32>
    %166 = arith.subf %164, %165 : vector<8x128xf32>
    %167 = math.absf %166 : vector<8x128xf32>
    %168 = arith.addf %161, %167 : vector<8x128xf32>
    %c0_72 = arith.constant 0 : index
    %c24 = arith.constant 24 : index
    %169 = vector.load %arg2[%c0_72, %c24] : memref<8x32xf32, #tpu.memory_space<vmem>>, vector<8x1xf32>
    %c24_73 = arith.constant 24 : index
    %c0_74 = arith.constant 0 : index
    %170 = vector.load %arg3[%c24_73, %c0_74] : memref<32x128xf32, #tpu.memory_space<vmem>>, vector<1x128xf32>
    %171 = vector.broadcast %169 : vector<8x1xf32> to vector<8x128xf32>
    %172 = vector.broadcast %170 : vector<1x128xf32> to vector<8x128xf32>
    %173 = arith.subf %171, %172 : vector<8x128xf32>
    %174 = math.absf %173 : vector<8x128xf32>
    %175 = arith.addf %168, %174 : vector<8x128xf32>
    %c0_75 = arith.constant 0 : index
    %c25 = arith.constant 25 : index
    %176 = vector.load %arg2[%c0_75, %c25] : memref<8x32xf32, #tpu.memory_space<vmem>>, vector<8x1xf32>
    %c25_76 = arith.constant 25 : index
    %c0_77 = arith.constant 0 : index
    %177 = vector.load %arg3[%c25_76, %c0_77] : memref<32x128xf32, #tpu.memory_space<vmem>>, vector<1x128xf32>
    %178 = vector.broadcast %176 : vector<8x1xf32> to vector<8x128xf32>
    %179 = vector.broadcast %177 : vector<1x128xf32> to vector<8x128xf32>
    %180 = arith.subf %178, %179 : vector<8x128xf32>
    %181 = math.absf %180 : vector<8x128xf32>
    %182 = arith.addf %175, %181 : vector<8x128xf32>
    %c0_78 = arith.constant 0 : index
    %c26 = arith.constant 26 : index
    %183 = vector.load %arg2[%c0_78, %c26] : memref<8x32xf32, #tpu.memory_space<vmem>>, vector<8x1xf32>
    %c26_79 = arith.constant 26 : index
    %c0_80 = arith.constant 0 : index
    %184 = vector.load %arg3[%c26_79, %c0_80] : memref<32x128xf32, #tpu.memory_space<vmem>>, vector<1x128xf32>
    %185 = vector.broadcast %183 : vector<8x1xf32> to vector<8x128xf32>
    %186 = vector.broadcast %184 : vector<1x128xf32> to vector<8x128xf32>
    %187 = arith.subf %185, %186 : vector<8x128xf32>
    %188 = math.absf %187 : vector<8x128xf32>
    %189 = arith.addf %182, %188 : vector<8x128xf32>
    %c0_81 = arith.constant 0 : index
    %c27 = arith.constant 27 : index
    %190 = vector.load %arg2[%c0_81, %c27] : memref<8x32xf32, #tpu.memory_space<vmem>>, vector<8x1xf32>
    %c27_82 = arith.constant 27 : index
    %c0_83 = arith.constant 0 : index
    %191 = vector.load %arg3[%c27_82, %c0_83] : memref<32x128xf32, #tpu.memory_space<vmem>>, vector<1x128xf32>
    %192 = vector.broadcast %190 : vector<8x1xf32> to vector<8x128xf32>
    %193 = vector.broadcast %191 : vector<1x128xf32> to vector<8x128xf32>
    %194 = arith.subf %192, %193 : vector<8x128xf32>
    %195 = math.absf %194 : vector<8x128xf32>
    %196 = arith.addf %189, %195 : vector<8x128xf32>
    %c0_84 = arith.constant 0 : index
    %c28 = arith.constant 28 : index
    %197 = vector.load %arg2[%c0_84, %c28] : memref<8x32xf32, #tpu.memory_space<vmem>>, vector<8x1xf32>
    %c28_85 = arith.constant 28 : index
    %c0_86 = arith.constant 0 : index
    %198 = vector.load %arg3[%c28_85, %c0_86] : memref<32x128xf32, #tpu.memory_space<vmem>>, vector<1x128xf32>
    %199 = vector.broadcast %197 : vector<8x1xf32> to vector<8x128xf32>
    %200 = vector.broadcast %198 : vector<1x128xf32> to vector<8x128xf32>
    %201 = arith.subf %199, %200 : vector<8x128xf32>
    %202 = math.absf %201 : vector<8x128xf32>
    %203 = arith.addf %196, %202 : vector<8x128xf32>
    %c0_87 = arith.constant 0 : index
    %c29 = arith.constant 29 : index
    %204 = vector.load %arg2[%c0_87, %c29] : memref<8x32xf32, #tpu.memory_space<vmem>>, vector<8x1xf32>
    %c29_88 = arith.constant 29 : index
    %c0_89 = arith.constant 0 : index
    %205 = vector.load %arg3[%c29_88, %c0_89] : memref<32x128xf32, #tpu.memory_space<vmem>>, vector<1x128xf32>
    %206 = vector.broadcast %204 : vector<8x1xf32> to vector<8x128xf32>
    %207 = vector.broadcast %205 : vector<1x128xf32> to vector<8x128xf32>
    %208 = arith.subf %206, %207 : vector<8x128xf32>
    %209 = math.absf %208 : vector<8x128xf32>
    %210 = arith.addf %203, %209 : vector<8x128xf32>
    %c0_90 = arith.constant 0 : index
    %c30 = arith.constant 30 : index
    %211 = vector.load %arg2[%c0_90, %c30] : memref<8x32xf32, #tpu.memory_space<vmem>>, vector<8x1xf32>
    %c30_91 = arith.constant 30 : index
    %c0_92 = arith.constant 0 : index
    %212 = vector.load %arg3[%c30_91, %c0_92] : memref<32x128xf32, #tpu.memory_space<vmem>>, vector<1x128xf32>
    %213 = vector.broadcast %211 : vector<8x1xf32> to vector<8x128xf32>
    %214 = vector.broadcast %212 : vector<1x128xf32> to vector<8x128xf32>
    %215 = arith.subf %213, %214 : vector<8x128xf32>
    %216 = math.absf %215 : vector<8x128xf32>
    %217 = arith.addf %210, %216 : vector<8x128xf32>
    %c0_93 = arith.constant 0 : index
    %c31 = arith.constant 31 : index
    %218 = vector.load %arg2[%c0_93, %c31] : memref<8x32xf32, #tpu.memory_space<vmem>>, vector<8x1xf32>
    %c31_94 = arith.constant 31 : index
    %c0_95 = arith.constant 0 : index
    %219 = vector.load %arg3[%c31_94, %c0_95] : memref<32x128xf32, #tpu.memory_space<vmem>>, vector<1x128xf32>
    %220 = vector.broadcast %218 : vector<8x1xf32> to vector<8x128xf32>
    %221 = vector.broadcast %219 : vector<1x128xf32> to vector<8x128xf32>
    %222 = arith.subf %220, %221 : vector<8x128xf32>
    %223 = math.absf %222 : vector<8x128xf32>
    %224 = arith.addf %217, %223 : vector<8x128xf32>
    %c0_96 = arith.constant 0 : index
    %225 = memref.load %arg7[%c0_96] : memref<3xf32, #tpu.memory_space<smem>>
    %c1_97 = arith.constant 1 : index
    %226 = memref.load %arg7[%c1_97] : memref<3xf32, #tpu.memory_space<smem>>
    %c2_98 = arith.constant 2 : index
    %227 = memref.load %arg7[%c2_98] : memref<3xf32, #tpu.memory_space<smem>>
    %c0_99 = arith.constant 0 : index
    %c0_100 = arith.constant 0 : index
    %228 = vector.load %arg4[%c0_99, %c0_100] : memref<8x1xf32, #tpu.memory_space<vmem>>, vector<8x1xf32>
    %cst_101 = arith.constant 0.000000e+00 : f32
    %229 = vector.broadcast %cst_101 : f32 to vector<8x1xf32>
    %230 = arith.subf %229, %228 : vector<8x1xf32>
    %cst_102 = arith.constant 0.000000e+00 : f32
    %231 = vector.broadcast %cst_102 : f32 to vector<8x1xf32>
    %232 = arith.maximumf %230, %231 : vector<8x1xf32>
    %233 = math.absf %230 : vector<8x1xf32>
    %cst_103 = arith.constant 0.000000e+00 : f32
    %234 = vector.broadcast %cst_103 : f32 to vector<8x1xf32>
    %235 = arith.subf %234, %233 : vector<8x1xf32>
    %236 = math.exp %235 : vector<8x1xf32>
    %cst_104 = arith.constant 1.000000e+00 : f32
    %237 = vector.broadcast %cst_104 : f32 to vector<8x1xf32>
    %238 = arith.addf %237, %236 : vector<8x1xf32>
    %239 = math.log %238 : vector<8x1xf32>
    %240 = arith.addf %232, %239 : vector<8x1xf32>
    %c0_105 = arith.constant 0 : index
    %c0_106 = arith.constant 0 : index
    %241 = vector.load %arg5[%c0_105, %c0_106] : memref<8x1xf32, #tpu.memory_space<vmem>>, vector<8x1xf32>
    %cst_107 = arith.constant 0.000000e+00 : f32
    %242 = vector.broadcast %cst_107 : f32 to vector<8x1xf32>
    %243 = arith.subf %242, %241 : vector<8x1xf32>
    %244 = math.exp %243 : vector<8x1xf32>
    %cst_108 = arith.constant 1.000000e+00 : f32
    %245 = vector.broadcast %cst_108 : f32 to vector<8x1xf32>
    %246 = arith.addf %245, %244 : vector<8x1xf32>
    %cst_109 = arith.constant 1.000000e+00 : f32
    %247 = vector.broadcast %cst_109 : f32 to vector<8x1xf32>
    %248 = arith.divf %247, %246 : vector<8x1xf32>
    %c0_110 = arith.constant 0 : index
    %c0_111 = arith.constant 0 : index
    %249 = vector.load %arg6[%c0_110, %c0_111] : memref<1x128xf32, #tpu.memory_space<vmem>>, vector<1x128xf32>
    %250 = vector.broadcast %248 : vector<8x1xf32> to vector<8x128xf32>
    %251 = vector.broadcast %249 : vector<1x128xf32> to vector<8x128xf32>
    %252 = arith.subf %250, %251 : vector<8x128xf32>
    %253 = math.absf %252 : vector<8x128xf32>
    %254 = vector.broadcast %225 : f32 to vector<8x128xf32>
    %255 = arith.mulf %254, %224 : vector<8x128xf32>
    %256 = vector.broadcast %226 : f32 to vector<8x1xf32>
    %257 = arith.mulf %256, %240 : vector<8x1xf32>
    %258 = vector.broadcast %257 : vector<8x1xf32> to vector<8x128xf32>
    %259 = arith.addf %255, %258 : vector<8x128xf32>
    %260 = vector.broadcast %227 : f32 to vector<8x128xf32>
    %261 = arith.mulf %260, %253 : vector<8x128xf32>
    %262 = arith.addf %259, %261 : vector<8x128xf32>
    %c0_112 = arith.constant 0 : index
    %c0_113 = arith.constant 0 : index
    %263 = vector.load %arg8[%c0_112, %c0_113] : memref<8x128xf32, #tpu.memory_space<vmem>>, vector<8x128xf32>
    tpu.vector_store %arg8[%c0_112, %c0_113], %262 {strides = array<i32>} : memref<8x128xf32, #tpu.memory_space<vmem>>, vector<8x128xf32>,
    return
  }
  func.func @transform_0(%arg0: i32, %arg1: i32) -> (i32, i32) {
    %c0_i32 = arith.constant 0 : i32
    %c0_i32_0 = arith.constant 0 : i32
    return %arg0, %c0_i32 : i32, i32
  }
  func.func @transform_1(%arg0: i32, %arg1: i32) -> (i32, i32) {
    %c0_i32 = arith.constant 0 : i32
    %c0_i32_0 = arith.constant 0 : i32
    return %c0_i32, %arg1 : i32, i32
  }
  func.func @transform_2(%arg0: i32, %arg1: i32) -> (i32, i32) {
    %c0_i32 = arith.constant 0 : i32
    %c0_i32_0 = arith.constant 0 : i32
    return %arg0, %c0_i32 : i32, i32
  }
  func.func @transform_3(%arg0: i32, %arg1: i32) -> (i32, i32) {
    %c0_i32 = arith.constant 0 : i32
    %c0_i32_0 = arith.constant 0 : i32
    return %arg0, %c0_i32 : i32, i32
  }
  func.func @transform_4(%arg0: i32, %arg1: i32) -> (i32, i32) {
    %c0_i32 = arith.constant 0 : i32
    %c0_i32_0 = arith.constant 0 : i32
    return %c0_i32, %arg1 : i32, i32
  }
  func.func @transform_5(%arg0: i32, %arg1: i32) -> i32 {
    %c0_i32 = arith.constant 0 : i32
    %c0_i32_0 = arith.constant 0 : i32
    return %c0_i32 : i32
  }
  func.func @transform_6(%arg0: i32, %arg1: i32) -> (i32, i32) {
    %c0_i32 = arith.constant 0 : i32
    return %arg0, %arg1 : i32, i32
  }
}

</mosaic_0001>

<llo_original>
// kernel: hungarian_cost_matrix.1
$region0: #{hungarian_cost_matrix.1}
  #allocation0 [shape = 'u32[]', space=smem, size = 0x4, offset = 0x4, fixed_abs, tag = 'smem constant byte address 0x4 - core index']
  #allocation1 [shape = 'u32[144,128]{1,0:T(1,128)}', space=vmem, size = 0x12000, scoped, tag = 'internal scratch']
  %s0 = inlined_call_operand.vmem [shape: f32[16,32], index: 0, kind: input, shape index: {}]
  %s1 = inlined_call_operand.vmem [shape: f32[32,128], index: 1, kind: input, shape index: {}]
  %s2 = inlined_call_operand.vmem [shape: f32[16,1], index: 2, kind: input, shape index: {}]
  %s3 = inlined_call_operand.vmem [shape: f32[16,1], index: 3, kind: input, shape index: {}]
  %s4 = inlined_call_operand.vmem [shape: f32[1,128], index: 4, kind: input, shape index: {}]
  %s5 = inlined_call_operand.vmem [shape: f32[3], index: 5, kind: input, shape index: {}]
  %s6 = inlined_call_operand.vmem [shape: f32[16,128], index: 6, kind: output, shape index: {}]
  %s7 = sld [smem:[#allocation0]]
  $region61: #{hungarian_cost_matrix.1} parent=0
    _
  %s9 = ssub.s32 1, %s7
  %s10 = scalar_select 0, %s9, %s7
  $region1: #{hungarian_cost_matrix.1} parent=0
    #allocation2 [shape = 'u8[512]{0}', space=smem, size = 0x200, scoped, tag = 'input window, operand 5, single buffered']
    #allocation3 [shape = 's32[2]{0}', space=sflag, size = 0x8, scoped, tag = 'scoped memory for hungarian_cost_matrix.1']
    %11 = vsyncpa [#allocation3], 0
    loop: start=0, step=1, limit=4
    $region2: #{hungarian_cost_matrix.1} parent=1 // loop_pre_header
      _
    $region3: #{hungarian_cost_matrix.1} parent=1 // loop_header
      %s13 = sphi 0, %s17
      %p14 = scmp.ge.s32.totalorder %s13, 4
      %s20 = sphi 0, %s32
      %s21 = sphi 0, %s28
      %s22 = sphi 0, %s20
      %s23 = sphi 0, %s21
      %s24 = sphi 0, %s22
      %s25 = sphi 0, %s23
      %s35 = sphi 0, %s37
      %s38 = sphi 0, %s35
      %s39 = sphi 0, %s38
      %s55 = sphi 0, %s39
      %s61 = sphi 0, %s63
      %s64 = sphi 0, %s61
      %s65 = sphi 0, %s64
      %s81 = sphi 0, %s65
      %s87 = sphi 0, %s89
      %s90 = sphi 0, %s87
      %s91 = sphi 0, %s90
      %s107 = sphi 0, %s91
      %s113 = sphi 0, %s115
      %s116 = sphi 0, %s113
      %s117 = sphi 0, %s116
      %s133 = sphi 0, %s117
      %s139 = sphi 0, %s141
      %s142 = sphi 0, %s139
      %s143 = sphi 0, %s142
      %s159 = sphi 0, %s143
      %s163 = sphi 0, %s163
      %s165 = sphi 0, %s163
      %s166 = sphi 0, %s165
      %s180 = sphi 0, %s166
      %s188 = sphi 0, %s190
      %s191 = sphi 0, %s188
      %s192 = sphi 0, %s191
      %s208 = sphi 0, %s192
    $region4: #{hungarian_cost_matrix.1} parent=1 // loop_header_branch
      %16 = sbr.rel (%p14) target = $region8
    $region5: #{hungarian_cost_matrix.1} parent=1 // loop_body
      %s18 = ssub.s32 %s13, 1
      %s19 = ssub.s32 %s13, 2
      %s26 = sadd.s32 1, %s21
      %p27 = scmp.ge.s32.totalorder %s26, 1
      %s28 = scalar_select %p27, 0, %s26
      %s29 = sadd.s32 1, %s20
      %s30 = scalar_select %p27, %s29, %s20
      %p31 = scmp.ge.s32.totalorder %s30, 2
      %s32 = scalar_select %p31, 0, %s30
      %s33 = ssub.s32 %s20, %s32
      %p34 = scmp.eq.s32.totalorder %s33, 0
      %s36 = sadd.s32 %s35, 1
      %s37 = scalar_select %p34, %s35, %s36
      %p40 = pneg %p34
      %p41 = scmp.eq.s32.totalorder %s13, 1
      %p42 = por %p40, %p41
      %p43 = scmp.ne.s32.totalorder %s35, %s38
      %p44 = scmp.eq.s32.totalorder %s13, 0
      %p45 = por %p43, %p44
      %p46 = scmp.ne.s32.totalorder %s35, %s38
      %p47 = scmp.eq.s32.totalorder %s18, 1
      %p48 = por %p46, %p47
      %p49 = scmp.ne.s32.totalorder %s38, %s39
      %p50 = scmp.eq.s32.totalorder %s18, 0
      %p51 = por %p49, %p50
      %p52 = scmp.ne.s32.totalorder %s38, %s39
      %p53 = scmp.eq.s32.totalorder %s19, 1
      %p54 = por %p52, %p53
      %p56 = scmp.ne.s32.totalorder %s39, %s55
      %p57 = scmp.eq.s32.totalorder %s19, 0
      %p58 = por %p56, %p57
      %s59 = ssub.s32 %s21, %s28
      %p60 = scmp.eq.s32.totalorder %s59, 0
      %s62 = sadd.s32 %s61, 1
      %s63 = scalar_select %p60, %s61, %s62
      %p66 = pneg %p60
      %p67 = scmp.eq.s32.totalorder %s13, 1
      %p68 = por %p66, %p67
      %p69 = scmp.ne.s32.totalorder %s61, %s64
      %p70 = scmp.eq.s32.totalorder %s13, 0
      %p71 = por %p69, %p70
      %p72 = scmp.ne.s32.totalorder %s61, %s64
      %p73 = scmp.eq.s32.totalorder %s18, 1
      %p74 = por %p72, %p73
      %p75 = scmp.ne.s32.totalorder %s64, %s65
      %p76 = scmp.eq.s32.totalorder %s18, 0
      %p77 = por %p75, %p76
      %p78 = scmp.ne.s32.totalorder %s64, %s65
      %p79 = scmp.eq.s32.totalorder %s19, 1
      %p80 = por %p78, %p79
      %p82 = scmp.ne.s32.totalorder %s65, %s81
      %p83 = scmp.eq.s32.totalorder %s19, 0
      %p84 = por %p82, %p83
      %s85 = ssub.s32 %s20, %s32
      %p86 = scmp.eq.s32.totalorder %s85, 0
      %s88 = sadd.s32 %s87, 1
      %s89 = scalar_select %p86, %s87, %s88
      %p92 = pneg %p86
      %p93 = scmp.eq.s32.totalorder %s13, 1
      %p94 = por %p92, %p93
      %p95 = scmp.ne.s32.totalorder %s87, %s90
      %p96 = scmp.eq.s32.totalorder %s13, 0
      %p97 = por %p95, %p96
      %p98 = scmp.ne.s32.totalorder %s87, %s90
      %p99 = scmp.eq.s32.totalorder %s18, 1
      %p100 = por %p98, %p99
      %p101 = scmp.ne.s32.totalorder %s90, %s91
      %p102 = scmp.eq.s32.totalorder %s18, 0
      %p103 = por %p101, %p102
      %p104 = scmp.ne.s32.totalorder %s90, %s91
      %p105 = scmp.eq.s32.totalorder %s19, 1
      %p106 = por %p104, %p105
      %p108 = scmp.ne.s32.totalorder %s91, %s107
      %p109 = scmp.eq.s32.totalorder %s19, 0
      %p110 = por %p108, %p109
      %s111 = ssub.s32 %s20, %s32
      %p112 = scmp.eq.s32.totalorder %s111, 0
      %s114 = sadd.s32 %s113, 1
      %s115 = scalar_select %p112, %s113, %s114
      %p118 = pneg %p112
      %p119 = scmp.eq.s32.totalorder %s13, 1
      %p120 = por %p118, %p119
      %p121 = scmp.ne.s32.totalorder %s113, %s116
      %p122 = scmp.eq.s32.totalorder %s13, 0
      %p123 = por %p121, %p122
      %p124 = scmp.ne.s32.totalorder %s113, %s116
      %p125 = scmp.eq.s32.totalorder %s18, 1
      %p126 = por %p124, %p125
      %p127 = scmp.ne.s32.totalorder %s116, %s117
      %p128 = scmp.eq.s32.totalorder %s18, 0
      %p129 = por %p127, %p128
      %p130 = scmp.ne.s32.totalorder %s116, %s117
      %p131 = scmp.eq.s32.totalorder %s19, 1
      %p132 = por %p130, %p131
      %p134 = scmp.ne.s32.totalorder %s117, %s133
      %p135 = scmp.eq.s32.totalorder %s19, 0
      %p136 = por %p134, %p135
      %s137 = ssub.s32 %s21, %s28
      %p138 = scmp.eq.s32.totalorder %s137, 0
      %s140 = sadd.s32 %s139, 1
      %s141 = scalar_select %p138, %s139, %s140
      %p144 = pneg %p138
      %p145 = scmp.eq.s32.totalorder %s13, 1
      %p146 = por %p144, %p145
      %p147 = scmp.ne.s32.totalorder %s139, %s142
      %p148 = scmp.eq.s32.totalorder %s13, 0
      %p149 = por %p147, %p148
      %p150 = scmp.ne.s32.totalorder %s139, %s142
      %p151 = scmp.eq.s32.totalorder %s18, 1
      %p152 = por %p150, %p151
      %p153 = scmp.ne.s32.totalorder %s142, %s143
      %p154 = scmp.eq.s32.totalorder %s18, 0
      %p155 = por %p153, %p154
      %p156 = scmp.ne.s32.totalorder %s142, %s143
      %p157 = scmp.eq.s32.totalorder %s19, 1
      %p158 = por %p156, %p157
      %p160 = scmp.ne.s32.totalorder %s143, %s159
      %p161 = scmp.eq.s32.totalorder %s19, 0
      %p162 = por %p160, %p161
      %s164 = sadd.s32 %s163, 1
      %p167 = scmp.eq.s32.totalorder %s13, 1
      %p168 = scmp.ne.s32.totalorder %s163, %s165
      %p169 = scmp.eq.s32.totalorder %s13, 0
      %p170 = por %p168, %p169
      %p171 = scmp.ne.s32.totalorder %s163, %s165
      %p172 = scmp.eq.s32.totalorder %s18, 1
      %p173 = por %p171, %p172
      %p174 = scmp.ne.s32.totalorder %s165, %s166
      %p175 = scmp.eq.s32.totalorder %s18, 0
      %p176 = por %p174, %p175
      %p177 = scmp.ne.s32.totalorder %s165, %s166
      %p178 = scmp.eq.s32.totalorder %s19, 1
      %p179 = por %p177, %p178
      %p181 = scmp.ne.s32.totalorder %s166, %s180
      %p182 = scmp.eq.s32.totalorder %s19, 0
      %p183 = por %p181, %p182
      %s184 = ssub.s32 %s20, %s32
      %s185 = ssub.s32 %s21, %s28
      %s186 = sor.u32 %s184, %s185
      %p187 = scmp.eq.s32.totalorder %s186, 0
      %s189 = sadd.s32 %s188, 1
      %s190 = scalar_select %p187, %s188, %s189
      %p193 = pneg %p187
      %p194 = scmp.eq.s32.totalorder %s13, 1
      %p195 = por %p193, %p194
      %p196 = scmp.ne.s32.totalorder %s188, %s191
      %p197 = scmp.eq.s32.totalorder %s13, 0
      %p198 = por %p196, %p197
      %p199 = scmp.ne.s32.totalorder %s188, %s191
      %p200 = scmp.eq.s32.totalorder %s18, 1
      %p201 = por %p199, %p200
      %p202 = scmp.ne.s32.totalorder %s191, %s192
      %p203 = scmp.eq.s32.totalorder %s18, 0
      %p204 = por %p202, %p203
      %p205 = scmp.ne.s32.totalorder %s191, %s192
      %p206 = scmp.eq.s32.totalorder %s19, 1
      %p207 = por %p205, %p206
      %p209 = scmp.ne.s32.totalorder %s192, %s208
      %p210 = scmp.eq.s32.totalorder %s19, 0
      %p211 = por %p209, %p210
      %p212 = scmp.le.s32.totalorder 1, %s13
      %p213 = scmp.lt.s32.totalorder %s13, 3
      %p214 = pnand %p212, %p213
      %p215 = pneg %p214
      // Predicated region
      $region9: #{hungarian_cost_matrix.1} parent=5 // pred_check
        _
      $region10: #{hungarian_cost_matrix.1} parent=5 // pred_check_branch
        %217 = sbr.rel (%p214) target = $region12
      $region11: #{hungarian_cost_matrix.1} parent=5 // pred_region
        %s218 = ssub.s32 %s13, 1
        // Predicated region
        $region13: #{hungarian_cost_matrix.1} parent=11 // pred_check
          %p219 = pneg %p77
        $region14: #{hungarian_cost_matrix.1} parent=11 // pred_check_branch
          %221 = sbr.rel (%p219) target = $region16
        $region15: #{hungarian_cost_matrix.1} parent=11 // pred_region
          %p222 = scmp.lt.s32.totalorder %s23, 0
          %s223 = scalar_select %p222, %s23, 0
          %s224 = smul.addr %s223, 8
          %s225 = scalar_lea.vmem %s1, %s224
        $region16: #{hungarian_cost_matrix.1} parent=11 // pred_fallthru
          _
        // Predicated region
        $region17: #{hungarian_cost_matrix.1} parent=11 // pred_check
          %p226 = pneg %p155
        $region18: #{hungarian_cost_matrix.1} parent=11 // pred_check_branch
          %228 = sbr.rel (%p226) target = $region20
        $region19: #{hungarian_cost_matrix.1} parent=11 // pred_region
          %p229 = scmp.lt.s32.totalorder %s23, 0
          %s230 = scalar_select %p229, %s23, 0
          %s231 = scalar_lea.vmem %s4, %s230
        $region20: #{hungarian_cost_matrix.1} parent=11 // pred_fallthru
          _
        // Predicated region
        $region21: #{hungarian_cost_matrix.1} parent=11 // pred_check
          %p232 = pneg %p176
        $region22: #{hungarian_cost_matrix.1} parent=11 // pred_check_branch
          %234 = sbr.rel (%p232) target = $region24
        $region23: #{hungarian_cost_matrix.1} parent=11 // pred_region
          %s236 = ssub.s32 16, 16
          %237 = vsyncadd [#allocation3], %s236
          %s239 = sshll.u32 %s5, 4
          %s240 = int_to_ptr.vmem [resolvable:$true] %s239
          %242 = dma.vmem_to_smem %s240, 16, [#allocation2], [#allocation3]
        $region24: #{hungarian_cost_matrix.1} parent=11 // pred_fallthru
          _
      $region12: #{hungarian_cost_matrix.1} parent=5 // pred_fallthru
        _
      %p243 = scmp.lt.s32.totalorder %s13, 2
      // Predicated region
      $region25: #{hungarian_cost_matrix.1} parent=5 // pred_check
        %p244 = pneg %p243
      $region26: #{hungarian_cost_matrix.1} parent=5 // pred_check_branch
        %246 = sbr.rel (%p244) target = $region28
      $region27: #{hungarian_cost_matrix.1} parent=5 // pred_region
        // Predicated region
        $region29: #{hungarian_cost_matrix.1} parent=27 // pred_check
          %p247 = pneg %p45
        $region30: #{hungarian_cost_matrix.1} parent=27 // pred_check_branch
          %249 = sbr.rel (%p247) target = $region32
        $region31: #{hungarian_cost_matrix.1} parent=27 // pred_region
          %p250 = scmp.lt.s32.totalorder %s20, 1
          %s251 = scalar_select %p250, %s20, 1
          %s252 = smul.addr %s251, 8
          %s253 = scalar_lea.vmem %s0, %s252
        $region32: #{hungarian_cost_matrix.1} parent=27 // pred_fallthru
          _
        // Predicated region
        $region33: #{hungarian_cost_matrix.1} parent=27 // pred_check
          %p254 = pneg %p97
        $region34: #{hungarian_cost_matrix.1} parent=27 // pred_check_branch
          %256 = sbr.rel (%p254) target = $region36
        $region35: #{hungarian_cost_matrix.1} parent=27 // pred_region
          %p257 = scmp.lt.s32.totalorder %s20, 1
          %s258 = scalar_select %p257, %s20, 1
          %s259 = smul.addr %s258, 8
          %s260 = scalar_lea.vmem %s2, %s259
        $region36: #{hungarian_cost_matrix.1} parent=27 // pred_fallthru
          _
        // Predicated region
        $region37: #{hungarian_cost_matrix.1} parent=27 // pred_check
          %p261 = pneg %p123
        $region38: #{hungarian_cost_matrix.1} parent=27 // pred_check_branch
          %263 = sbr.rel (%p261) target = $region40
        $region39: #{hungarian_cost_matrix.1} parent=27 // pred_region
          %p264 = scmp.lt.s32.totalorder %s20, 1
          %s265 = scalar_select %p264, %s20, 1
          %s266 = smul.addr %s265, 8
          %s267 = scalar_lea.vmem %s3, %s266
        $region40: #{hungarian_cost_matrix.1} parent=27 // pred_fallthru
          _
      $region28: #{hungarian_cost_matrix.1} parent=5 // pred_fallthru
        _
      %p268 = scmp.le.s32.totalorder 1, %s13
      %p269 = scmp.lt.s32.totalorder %s13, 3
      %p270 = pnand %p268, %p269
      %p271 = pneg %p270
      // Predicated region
      $region41: #{hungarian_cost_matrix.1} parent=5 // pred_check
        _
      $region42: #{hungarian_cost_matrix.1} parent=5 // pred_check_branch
        %273 = sbr.rel (%p270) target = $region44
      $region43: #{hungarian_cost_matrix.1} parent=5 // pred_region
        %s274 = ssub.s32 %s13, 1
        // Predicated region
        $region45: #{hungarian_cost_matrix.1} parent=43 // pred_check
          %p275 = pneg %p176
        $region46: #{hungarian_cost_matrix.1} parent=43 // pred_check_branch
          %277 = sbr.rel (%p275) target = $region48
        $region47: #{hungarian_cost_matrix.1} parent=43 // pred_region
          %278 = dma.done [#allocation3], 16
        $region48: #{hungarian_cost_matrix.1} parent=43 // pred_fallthru
          _
        %279 = sfence
        %p280 = scmp.lt.s32.totalorder %s22, 1
        %s281 = scalar_select %p280, %s22, 1
        %s282 = smul.addr %s281, 8
        %s283 = scalar_lea.vmem %s0, %s282
        %p284 = pneg %p51
        %p285 = pneg %p48
        %p286 = scmp.lt.s32.totalorder %s23, 0
        %s287 = scalar_select %p286, %s23, 0
        %s288 = smul.addr %s287, 8
        %s289 = scalar_lea.vmem %s1, %s288
        %p290 = pneg %p77
        %p291 = pneg %p74
        %p292 = scmp.lt.s32.totalorder %s22, 1
        %s293 = scalar_select %p292, %s22, 1
        %s294 = smul.addr %s293, 8
        %s295 = scalar_lea.vmem %s2, %s294
        %p296 = pneg %p103
        %p297 = pneg %p100
        %p298 = scmp.lt.s32.totalorder %s22, 1
        %s299 = scalar_select %p298, %s22, 1
        %s300 = smul.addr %s299, 8
        %s301 = scalar_lea.vmem %s3, %s300
        %p302 = pneg %p129
        %p303 = pneg %p126
        %p304 = scmp.lt.s32.totalorder %s23, 0
        %s305 = scalar_select %p304, %s23, 0
        %s306 = scalar_lea.vmem %s4, %s305
        %p307 = pneg %p155
        %p308 = pneg %p152
        %p309 = pneg %p176
        %p310 = pneg %p173
        %p311 = pneg %p204
        %p312 = pneg %p201
        %p313 = scmp.lt.s32.totalorder %s22, 1
        %s314 = scalar_select %p313, %s22, 1
        %p315 = scmp.lt.s32.totalorder %s23, 0
        %s316 = scalar_select %p315, %s23, 0
        %s317 = sadd.s32 %s316, %s314
        %s318 = smul.addr %s317, 8
        %s319 = scalar_lea.vmem %s6, %s318
        %p320 = scmp.lt.s32.totalorder %s22, 1
        %s321 = scalar_select %p320, %s22, 1
        %s322 = smul.addr %s321, 8
        %s323 = scalar_lea.vmem %s0, %s322
        %p324 = scmp.lt.s32.totalorder %s23, 0
        %s325 = scalar_select %p324, %s23, 0
        %s326 = smul.addr %s325, 8
        %s327 = scalar_lea.vmem %s1, %s326
        %p328 = scmp.lt.s32.totalorder %s22, 1
        %s329 = scalar_select %p328, %s22, 1
        %s330 = smul.addr %s329, 8
        %s331 = scalar_lea.vmem %s2, %s330
        %p332 = scmp.lt.s32.totalorder %s22, 1
        %s333 = scalar_select %p332, %s22, 1
        %s334 = smul.addr %s333, 8
        %s335 = scalar_lea.vmem %s3, %s334
        %p336 = scmp.lt.s32.totalorder %s23, 0
        %s337 = scalar_select %p336, %s23, 0
        %s338 = scalar_lea.vmem %s4, %s337
        %p339 = scmp.lt.s32.totalorder %s22, 1
        %s340 = scalar_select %p339, %s22, 1
        %p341 = scmp.lt.s32.totalorder %s23, 0
        %s342 = scalar_select %p341, %s23, 0
        %s343 = sadd.s32 %s342, %s340
        %s344 = smul.addr %s343, 8
        %s345 = scalar_lea.vmem %s6, %s344
        %v346 = vld [vmem:[%s323] sm:$0xff]
        %v347 = vld [vmem:[%s327] sm:$0x1]
        %349 = vset.pattern.permute.xlu0 0
        %350 = vperm.xlu0 %349, %v346
        %v351 = vpop.permute.xlu0 %350
        %v353 = vlaneseq
        %v354 = vshrl.u32 %v353, 7
        %v355 = vsub.s32 0, %v354
        %v356 = vrot.slane %v347, %v355
        %v357 = vsub.f32 %v351, %v356
        %v358 = vand.u32 2147483647, %v357
        %v359 = vadd.f32 %v358, 0.0
        %v360 = vld [vmem:[%s327 + $0x1] sm:$0x1]
        %361 = vset.pattern.permute.xlu0 1
        %362 = vperm.xlu0 %361, %v346
        %v363 = vpop.permute.xlu0 %362
        %v365 = vlaneseq
        %v366 = vshrl.u32 %v365, 7
        %v367 = vsub.s32 0, %v366
        %v368 = vrot.slane %v360, %v367
        %v369 = vsub.f32 %v363, %v368
        %v370 = vand.u32 2147483647, %v369
        %v371 = vadd.f32 %v359, %v370
        %v372 = vld [vmem:[%s327 + $0x2] sm:$0x1]
        %373 = vset.pattern.permute.xlu0 2
        %374 = vperm.xlu0 %373, %v346
        %v375 = vpop.permute.xlu0 %374
        %v377 = vlaneseq
        %v378 = vshrl.u32 %v377, 7
        %v379 = vsub.s32 0, %v378
        %v380 = vrot.slane %v372, %v379
        %v381 = vsub.f32 %v375, %v380
        %v382 = vand.u32 2147483647, %v381
        %v383 = vadd.f32 %v371, %v382
        %v384 = vld [vmem:[%s327 + $0x3] sm:$0x1]
        %385 = vset.pattern.permute.xlu0 3
        %386 = vperm.xlu0 %385, %v346
        %v387 = vpop.permute.xlu0 %386
        %v389 = vlaneseq
        %v390 = vshrl.u32 %v389, 7
        %v391 = vsub.s32 0, %v390
        %v392 = vrot.slane %v384, %v391
        %v393 = vsub.f32 %v387, %v392
        %v394 = vand.u32 2147483647, %v393
        %v395 = vadd.f32 %v383, %v394
        %v396 = vld [vmem:[%s327 + $0x4] sm:$0x1]
        %397 = vset.pattern.permute.xlu0 4
        %398 = vperm.xlu0 %397, %v346
        %v399 = vpop.permute.xlu0 %398
        %v401 = vlaneseq
        %v402 = vshrl.u32 %v401, 7
        %v403 = vsub.s32 0, %v402
        %v404 = vrot.slane %v396, %v403
        %v405 = vsub.f32 %v399, %v404
        %v406 = vand.u32 2147483647, %v405
        %v407 = vadd.f32 %v395, %v406
        %v408 = vld [vmem:[%s327 + $0x5] sm:$0x1]
        %409 = vset.pattern.permute.xlu0 5
        %410 = vperm.xlu0 %409, %v346
        %v411 = vpop.permute.xlu0 %410
        %v413 = vlaneseq
        %v414 = vshrl.u32 %v413, 7
        %v415 = vsub.s32 0, %v414
        %v416 = vrot.slane %v408, %v415
        %v417 = vsub.f32 %v411, %v416
        %v418 = vand.u32 2147483647, %v417
        %v419 = vadd.f32 %v407, %v418
        %v420 = vld [vmem:[%s327 + $0x6] sm:$0x1]
        %421 = vset.pattern.permute.xlu0 6
        %422 = vperm.xlu0 %421, %v346
        %v423 = vpop.permute.xlu0 %422
        %v425 = vlaneseq
        %v426 = vshrl.u32 %v425, 7
        %v427 = vsub.s32 0, %v426
        %v428 = vrot.slane %v420, %v427
        %v429 = vsub.f32 %v423, %v428
        %v430 = vand.u32 2147483647, %v429
        %v431 = vadd.f32 %v419, %v430
        %v432 = vld [vmem:[%s327 + $0x7] sm:$0x1]
        %433 = vset.pattern.permute.xlu0 7
        %434 = vperm.xlu0 %433, %v346
        %v435 = vpop.permute.xlu0 %434
        %v437 = vlaneseq
        %v438 = vshrl.u32 %v437, 7
        %v439 = vsub.s32 0, %v438
        %v440 = vrot.slane %v432, %v439
        %v441 = vsub.f32 %v435, %v440
        %v442 = vand.u32 2147483647, %v441
        %v443 = vadd.f32 %v431, %v442
        %v444 = vld [vmem:[%s327 + $0x8] sm:$0x1]
        %445 = vset.pattern.permute.xlu0 8
        %446 = vperm.xlu0 %445, %v346
        %v447 = vpop.permute.xlu0 %446
        %v449 = vlaneseq
        %v450 = vshrl.u32 %v449, 7
        %v451 = vsub.s32 0, %v450
        %v452 = vrot.slane %v444, %v451
        %v453 = vsub.f32 %v447, %v452
        %v454 = vand.u32 2147483647, %v453
        %v455 = vadd.f32 %v443, %v454
        %v456 = vld [vmem:[%s327 + $0x9] sm:$0x1]
        %457 = vset.pattern.permute.xlu0 9
        %458 = vperm.xlu0 %457, %v346
        %v459 = vpop.permute.xlu0 %458
        %v461 = vlaneseq
        %v462 = vshrl.u32 %v461, 7
        %v463 = vsub.s32 0, %v462
        %v464 = vrot.slane %v456, %v463
        %v465 = vsub.f32 %v459, %v464
        %v466 = vand.u32 2147483647, %v465
        %v467 = vadd.f32 %v455, %v466
        %v468 = vld [vmem:[%s327 + $0xa] sm:$0x1]
        %469 = vset.pattern.permute.xlu0 10
        %470 = vperm.xlu0 %469, %v346
        %v471 = vpop.permute.xlu0 %470
        %v473 = vlaneseq
        %v474 = vshrl.u32 %v473, 7
        %v475 = vsub.s32 0, %v474
        %v476 = vrot.slane %v468, %v475
        %v477 = vsub.f32 %v471, %v476
        %v478 = vand.u32 2147483647, %v477
        %v479 = vadd.f32 %v467, %v478
        %v480 = vld [vmem:[%s327 + $0xb] sm:$0x1]
        %481 = vset.pattern.permute.xlu0 11
        %482 = vperm.xlu0 %481, %v346
        %v483 = vpop.permute.xlu0 %482
        %v485 = vlaneseq
        %v486 = vshrl.u32 %v485, 7
        %v487 = vsub.s32 0, %v486
        %v488 = vrot.slane %v480, %v487
        %v489 = vsub.f32 %v483, %v488
        %v490 = vand.u32 2147483647, %v489
        %v491 = vadd.f32 %v479, %v490
        %v492 = vld [vmem:[%s327 + $0xc] sm:$0x1]
        %493 = vset.pattern.permute.xlu0 12
        %494 = vperm.xlu0 %493, %v346
        %v495 = vpop.permute.xlu0 %494
        %v497 = vlaneseq
        %v498 = vshrl.u32 %v497, 7
        %v499 = vsub.s32 0, %v498
        %v500 = vrot.slane %v492, %v499
        %v501 = vsub.f32 %v495, %v500
        %v502 = vand.u32 2147483647, %v501
        %v503 = vadd.f32 %v491, %v502
        %v504 = vld [vmem:[%s327 + $0xd] sm:$0x1]
        %505 = vset.pattern.permute.xlu0 13
        %506 = vperm.xlu0 %505, %v346
        %v507 = vpop.permute.xlu0 %506
        %v509 = vlaneseq
        %v510 = vshrl.u32 %v509, 7
        %v511 = vsub.s32 0, %v510
        %v512 = vrot.slane %v504, %v511
        %v513 = vsub.f32 %v507, %v512
        %v514 = vand.u32 2147483647, %v513
        %v515 = vadd.f32 %v503, %v514
        %v516 = vld [vmem:[%s327 + $0xe] sm:$0x1]
        %517 = vset.pattern.permute.xlu0 14
        %518 = vperm.xlu0 %517, %v346
        %v519 = vpop.permute.xlu0 %518
        %v521 = vlaneseq
        %v522 = vshrl.u32 %v521, 7
        %v523 = vsub.s32 0, %v522
        %v524 = vrot.slane %v516, %v523
        %v525 = vsub.f32 %v519, %v524
        %v526 = vand.u32 2147483647, %v525
        %v527 = vadd.f32 %v515, %v526
        %v528 = vld [vmem:[%s327 + $0xf] sm:$0x1]
        %529 = vset.pattern.permute.xlu0 15
        %530 = vperm.xlu0 %529, %v346
        %v531 = vpop.permute.xlu0 %530
        %v533 = vlaneseq
        %v534 = vshrl.u32 %v533, 7
        %v535 = vsub.s32 0, %v534
        %v536 = vrot.slane %v528, %v535
        %v537 = vsub.f32 %v531, %v536
        %v538 = vand.u32 2147483647, %v537
        %v539 = vadd.f32 %v527, %v538
        %v540 = vld [vmem:[%s327 + $0x10] sm:$0x1]
        %541 = vset.pattern.permute.xlu0 16
        %542 = vperm.xlu0 %541, %v346
        %v543 = vpop.permute.xlu0 %542
        %v545 = vlaneseq
        %v546 = vshrl.u32 %v545, 7
        %v547 = vsub.s32 0, %v546
        %v548 = vrot.slane %v540, %v547
        %v549 = vsub.f32 %v543, %v548
        %v550 = vand.u32 2147483647, %v549
        %v551 = vadd.f32 %v539, %v550
        %v552 = vld [vmem:[%s327 + $0x11] sm:$0x1]
        %553 = vset.pattern.permute.xlu0 17
        %554 = vperm.xlu0 %553, %v346
        %v555 = vpop.permute.xlu0 %554
        %v557 = vlaneseq
        %v558 = vshrl.u32 %v557, 7
        %v559 = vsub.s32 0, %v558
        %v560 = vrot.slane %v552, %v559
        %v561 = vsub.f32 %v555, %v560
        %v562 = vand.u32 2147483647, %v561
        %v563 = vadd.f32 %v551, %v562
        %v564 = vld [vmem:[%s327 + $0x12] sm:$0x1]
        %565 = vset.pattern.permute.xlu0 18
        %566 = vperm.xlu0 %565, %v346
        %v567 = vpop.permute.xlu0 %566
        %v569 = vlaneseq
        %v570 = vshrl.u32 %v569, 7
        %v571 = vsub.s32 0, %v570
        %v572 = vrot.slane %v564, %v571
        %v573 = vsub.f32 %v567, %v572
        %v574 = vand.u32 2147483647, %v573
        %v575 = vadd.f32 %v563, %v574
        %v576 = vld [vmem:[%s327 + $0x13] sm:$0x1]
        %577 = vset.pattern.permute.xlu0 19
        %578 = vperm.xlu0 %577, %v346
        %v579 = vpop.permute.xlu0 %578
        %v581 = vlaneseq
        %v582 = vshrl.u32 %v581, 7
        %v583 = vsub.s32 0, %v582
        %v584 = vrot.slane %v576, %v583
        %v585 = vsub.f32 %v579, %v584
        %v586 = vand.u32 2147483647, %v585
        %v587 = vadd.f32 %v575, %v586
        %v588 = vld [vmem:[%s327 + $0x14] sm:$0x1]
        %589 = vset.pattern.permute.xlu0 20
        %590 = vperm.xlu0 %589, %v346
        %v591 = vpop.permute.xlu0 %590
        %v593 = vlaneseq
        %v594 = vshrl.u32 %v593, 7
        %v595 = vsub.s32 0, %v594
        %v596 = vrot.slane %v588, %v595
        %v597 = vsub.f32 %v591, %v596
        %v598 = vand.u32 2147483647, %v597
        %v599 = vadd.f32 %v587, %v598
        %v600 = vld [vmem:[%s327 + $0x15] sm:$0x1]
        %601 = vset.pattern.permute.xlu0 21
        %602 = vperm.xlu0 %601, %v346
        %v603 = vpop.permute.xlu0 %602
        %v605 = vlaneseq
        %v606 = vshrl.u32 %v605, 7
        %v607 = vsub.s32 0, %v606
        %v608 = vrot.slane %v600, %v607
        %v609 = vsub.f32 %v603, %v608
        %v610 = vand.u32 2147483647, %v609
        %v611 = vadd.f32 %v599, %v610
        %v612 = vld [vmem:[%s327 + $0x16] sm:$0x1]
        %613 = vset.pattern.permute.xlu0 22
        %614 = vperm.xlu0 %613, %v346
        %v615 = vpop.permute.xlu0 %614
        %v617 = vlaneseq
        %v618 = vshrl.u32 %v617, 7
        %v619 = vsub.s32 0, %v618
        %v620 = vrot.slane %v612, %v619
        %v621 = vsub.f32 %v615, %v620
        %v622 = vand.u32 2147483647, %v621
        %v623 = vadd.f32 %v611, %v622
        %v624 = vld [vmem:[%s327 + $0x17] sm:$0x1]
        %625 = vset.pattern.permute.xlu0 23
        %626 = vperm.xlu0 %625, %v346
        %v627 = vpop.permute.xlu0 %626
        %v629 = vlaneseq
        %v630 = vshrl.u32 %v629, 7
        %v631 = vsub.s32 0, %v630
        %v632 = vrot.slane %v624, %v631
        %v633 = vsub.f32 %v627, %v632
        %v634 = vand.u32 2147483647, %v633
        %v635 = vadd.f32 %v623, %v634
        %v636 = vld [vmem:[%s327 + $0x18] sm:$0x1]
        %637 = vset.pattern.permute.xlu0 24
        %638 = vperm.xlu0 %637, %v346
        %v639 = vpop.permute.xlu0 %638
        %v641 = vlaneseq
        %v642 = vshrl.u32 %v641, 7
        %v643 = vsub.s32 0, %v642
        %v644 = vrot.slane %v636, %v643
        %v645 = vsub.f32 %v639, %v644
        %v646 = vand.u32 2147483647, %v645
        %v647 = vadd.f32 %v635, %v646
        %v648 = vld [vmem:[%s327 + $0x19] sm:$0x1]
        %649 = vset.pattern.permute.xlu0 25
        %650 = vperm.xlu0 %649, %v346
        %v651 = vpop.permute.xlu0 %650
        %v653 = vlaneseq
        %v654 = vshrl.u32 %v653, 7
        %v655 = vsub.s32 0, %v654
        %v656 = vrot.slane %v648, %v655
        %v657 = vsub.f32 %v651, %v656
        %v658 = vand.u32 2147483647, %v657
        %v659 = vadd.f32 %v647, %v658
        %v660 = vld [vmem:[%s327 + $0x1a] sm:$0x1]
        %661 = vset.pattern.permute.xlu0 26
        %662 = vperm.xlu0 %661, %v346
        %v663 = vpop.permute.xlu0 %662
        %v665 = vlaneseq
        %v666 = vshrl.u32 %v665, 7
        %v667 = vsub.s32 0, %v666
        %v668 = vrot.slane %v660, %v667
        %v669 = vsub.f32 %v663, %v668
        %v670 = vand.u32 2147483647, %v669
        %v671 = vadd.f32 %v659, %v670
        %v672 = vld [vmem:[%s327 + $0x1b] sm:$0x1]
        %673 = vset.pattern.permute.xlu0 27
        %674 = vperm.xlu0 %673, %v346
        %v675 = vpop.permute.xlu0 %674
        %v677 = vlaneseq
        %v678 = vshrl.u32 %v677, 7
        %v679 = vsub.s32 0, %v678
        %v680 = vrot.slane %v672, %v679
        %v681 = vsub.f32 %v675, %v680
        %v682 = vand.u32 2147483647, %v681
        %v683 = vadd.f32 %v671, %v682
        %v684 = vld [vmem:[%s327 + $0x1c] sm:$0x1]
        %685 = vset.pattern.permute.xlu0 28
        %686 = vperm.xlu0 %685, %v346
        %v687 = vpop.permute.xlu0 %686
        %v689 = vlaneseq
        %v690 = vshrl.u32 %v689, 7
        %v691 = vsub.s32 0, %v690
        %v692 = vrot.slane %v684, %v691
        %v693 = vsub.f32 %v687, %v692
        %v694 = vand.u32 2147483647, %v693
        %v695 = vadd.f32 %v683, %v694
        %v696 = vld [vmem:[%s327 + $0x1d] sm:$0x1]
        %697 = vset.pattern.permute.xlu0 29
        %698 = vperm.xlu0 %697, %v346
        %v699 = vpop.permute.xlu0 %698
        %v701 = vlaneseq
        %v702 = vshrl.u32 %v701, 7
        %v703 = vsub.s32 0, %v702
        %v704 = vrot.slane %v696, %v703
        %v705 = vsub.f32 %v699, %v704
        %v706 = vand.u32 2147483647, %v705
        %v707 = vadd.f32 %v695, %v706
        %v708 = vld [vmem:[%s327 + $0x1e] sm:$0x1]
        %709 = vset.pattern.permute.xlu0 30
        %710 = vperm.xlu0 %709, %v346
        %v711 = vpop.permute.xlu0 %710
        %v713 = vlaneseq
        %v714 = vshrl.u32 %v713, 7
        %v715 = vsub.s32 0, %v714
        %v716 = vrot.slane %v708, %v715
        %v717 = vsub.f32 %v711, %v716
        %v718 = vand.u32 2147483647, %v717
        %v719 = vadd.f32 %v707, %v718
        %v720 = vld [vmem:[%s327 + $0x1f] sm:$0x1]
        %721 = vset.pattern.permute.xlu0 31
        %722 = vperm.xlu0 %721, %v346
        %v723 = vpop.permute.xlu0 %722
        %v725 = vlaneseq
        %v726 = vshrl.u32 %v725, 7
        %v727 = vsub.s32 0, %v726
        %v728 = vrot.slane %v720, %v727
        %v729 = vsub.f32 %v723, %v728
        %v730 = vand.u32 2147483647, %v729
        %v731 = vadd.f32 %v719, %v730
        %s732 = sld [smem:[#allocation2]]
        %s733 = sld [smem:[#allocation2 + $0x1]]
        %s734 = sld [smem:[#allocation2 + $0x2]]
        %v735 = vld [vmem:[%s331] sm:$0xff]
        %v736 = vsub.f32 0.0, %v735
        %v737 = vmax.f32 %v736, 0.0
        %v738 = vand.u32 2147483647, %v736
        %v739 = vsub.f32 0.0, %v738
        %v740 = vmul.f32 %v739, 1.442695
        %v741 = vpow.pop %v740
        %v742 = vadd.f32 %v741, 1.0
        %v743 = vlog2.pop %v742
        %v744 = vmul.f32 %v743, 0.6931472
        %v745 = vadd.f32 %v737, %v744
        %v746 = vld [vmem:[%s335] sm:$0xff]
        %v747 = vsub.f32 0.0, %v746
        %v748 = vmul.f32 %v747, 1.442695
        %v749 = vpow.pop %v748
        %v750 = vadd.f32 %v749, 1.0
        %v751 = vrcp.pop %v750
        %v752 = vmul.f32 1.0, %v751
        %v753 = vld [vmem:[%s338] sm:$0x1]
        %755 = vset.pattern.permute.xlu0 0
        %756 = vperm.xlu0 %755, %v752
        %v757 = vpop.permute.xlu0 %756
        %v760 = vlaneseq
        %v761 = vshrl.u32 %v760, 7
        %v762 = vsub.s32 0, %v761
        %v763 = vrot.slane %v753, %v762
        %v765 = vsub.f32 %v757, %v763
        %v766 = vand.u32 2147483647, %v765
        %v767 = vstv %s732
        %v768 = vmul.f32 %v767, %v731
        %v769 = vstv %s733
        %v770 = vmul.f32 %v769, %v745
        %772 = vset.pattern.permute.xlu0 0
        %773 = vperm.xlu0 %772, %v770
        %v774 = vpop.permute.xlu0 %773
        %v776 = vadd.f32 %v768, %v774
        %v777 = vstv %s734
        %v778 = vmul.f32 %v777, %v766
        %v779 = vadd.f32 %v776, %v778
        %780 = vst [vmem:[%s345] sm:$0xff] %v779
        %p781 = scmp.lt.s32.totalorder %s22, 1
        %s782 = scalar_select %p781, %s22, 1
        %p783 = scmp.lt.s32.totalorder %s23, 0
        %s784 = scalar_select %p783, %s23, 0
        %s785 = sadd.s32 %s784, %s782
        %s786 = smul.addr %s785, 8
        %s787 = scalar_lea.vmem %s6, %s786
        // Predicated region
        $region49: #{hungarian_cost_matrix.1} parent=43 // pred_check
          %p788 = pneg %p201
        $region50: #{hungarian_cost_matrix.1} parent=43 // pred_check_branch
          %790 = sbr.rel (%p788) target = $region52
        $region51: #{hungarian_cost_matrix.1} parent=43 // pred_region
          _
        $region52: #{hungarian_cost_matrix.1} parent=43 // pred_fallthru
          _
      $region44: #{hungarian_cost_matrix.1} parent=5 // pred_fallthru
        _
      %p791 = scmp.le.s32.totalorder 2, %s13
      // Predicated region
      $region53: #{hungarian_cost_matrix.1} parent=5 // pred_check
        %p792 = pneg %p791
      $region54: #{hungarian_cost_matrix.1} parent=5 // pred_check_branch
        %794 = sbr.rel (%p792) target = $region56
      $region55: #{hungarian_cost_matrix.1} parent=5 // pred_region
        %s795 = ssub.s32 %s13, 2
        // Predicated region
        $region57: #{hungarian_cost_matrix.1} parent=55 // pred_check
          %p796 = pneg %p207
        $region58: #{hungarian_cost_matrix.1} parent=55 // pred_check_branch
          %798 = sbr.rel (%p796) target = $region60
        $region59: #{hungarian_cost_matrix.1} parent=55 // pred_region
          %p799 = scmp.lt.s32.totalorder %s24, 1
          %s800 = scalar_select %p799, %s24, 1
          %p801 = scmp.lt.s32.totalorder %s25, 0
          %s802 = scalar_select %p801, %s25, 0
          %s803 = sadd.s32 %s802, %s800
          %s804 = smul.addr %s803, 8
          %s805 = scalar_lea.vmem %s6, %s804
        $region60: #{hungarian_cost_matrix.1} parent=55 // pred_fallthru
          _
      $region56: #{hungarian_cost_matrix.1} parent=5 // pred_fallthru
        _
    $region6: #{hungarian_cost_matrix.1} parent=1 // loop_footer
      %s17 = sadd.s32 1, %s13
    $region7: #{hungarian_cost_matrix.1} parent=1 // loop_footer_branch
      %12 = sbr.rel target = $region3
    $region8: #{hungarian_cost_matrix.1} parent=1 // loop_exit
      _
    %806 = vsyncpa [#allocation3], 1
    %s807 = scalar_lea.sflag [#allocation3], 1
    %808 = vsyncpa %s807, 1

</llo_original>
